<compile_context>
chip_gen: v6e
topology: v6e:2x2x1
jax: 0.10.0
libtpu: 0.0.40
codegen_flags: <defaults>
</compile_context>

<pallas_src>
import functools

import jax
import jax.numpy as jnp
from jax import lax
from jax.experimental import pallas as pl
from jax.experimental.pallas import tpu as pltpu


def _round_up(n, m):
    return ((n + m - 1) // m) * m


def mlp_kernel(x_ref, w1_ref, b1_ref, w2_ref, b2_ref, w3_ref, b3_ref, out_ref,
               *, sub_b, n_sub):
    def body(s, carry):
        r0 = pl.multiple_of(s * sub_b, sub_b)
        xb = x_ref[pl.ds(r0, sub_b), :]

        # fc1 + ReLU (MXU matmul, f32 accumulation; bias-add/ReLU in f32).
        w1 = w1_ref[...]
        h1 = jnp.dot(xb.astype(w1.dtype), w1, preferred_element_type=jnp.float32)
        h1 = jnp.maximum(h1 + b1_ref[...], 0.0)

        # fc2 + ReLU
        w2 = w2_ref[...]
        h2 = jnp.dot(h1.astype(w2.dtype), w2, preferred_element_type=jnp.float32)
        h2 = jnp.maximum(h2 + b2_ref[...], 0.0)

        # fc3 (no activation); real num_classes columns only (no lane padding).
        w3 = w3_ref[...]
        h3 = jnp.dot(h2.astype(w3.dtype), w3, preferred_element_type=jnp.float32)
        out_ref[pl.ds(r0, sub_b), :] = (h3 + b3_ref[...]).astype(out_ref.dtype)
        return carry

    # Fully unroll only short loops; long trip counts stay rolled to bound
    # code size / live ranges.
    lax.fori_loop(0, n_sub, body, 0, unroll=(n_sub <= 8))


def _const_spec(a):
    # Weight / bias blocks: full array, same block every grid step.
    return pl.BlockSpec(a.shape, lambda i: (0,) * a.ndim)


def trajectory_mlp(x, params, *, block_b=8192, sub_b=128,
                   param_dtype=jnp.bfloat16):
    """Fused MLP forward.

    x: (B, input_dim) f32.
    params: weights stored transposed vs PyTorch, i.e. (in, out); biases (1, out).
    param_dtype: dtype for the weights (bf16 default, MXU-native); accumulation
    and bias-add/ReLU stay float32.  Use None to keep f32 weights.
    """
    B, in_dim = x.shape
    w1, b1 = params["w1"], params["b1"]
    w2, b2 = params["w2"], params["b2"]
    w3, b3 = params["w3"], params["b3"]
    hidden = w1.shape[1]
    num_classes = w3.shape[1]

    if param_dtype is not None:
        w1 = w1.astype(param_dtype)
        w2 = w2.astype(param_dtype)
        w3 = w3.astype(param_dtype)

    # --- batch tiling ---------------------------------------------------
    # Keep tiles large (amortize per-grid-step overhead) but ensure >= 2 grid
    # steps when the batch allows it (v7x megacore sharding of the parallel
    # axis).  Tiles are multiples of 8 rows unless the whole batch fits.
    block_b = max(8, int(block_b))
    block_b = min(block_b, _round_up(pl.cdiv(B, 2), 8))
    if block_b >= B:
        block_b = B

    # In-kernel sub-block size (bounds live activation vregs).
    sub_b = min(sub_b, block_b)
    if sub_b <= 0 or block_b % sub_b != 0:
        sub_b = block_b
    n_sub = block_b // sub_b

    grid = (pl.cdiv(B, block_b),)

    # Advisory cost estimate (actual, unpadded traffic).
    flops = 2 * B * (in_dim * hidden + hidden * hidden + hidden * num_classes)
    bytes_accessed = (
        B * in_dim * x.dtype.itemsize
        + B * num_classes * x.dtype.itemsize
        + w1.size * w1.dtype.itemsize
        + w2.size * w2.dtype.itemsize
        + w3.size * w3.dtype.itemsize
        + (b1.size + b2.size + b3.size) * b1.dtype.itemsize
    )
    cost = pl.CostEstimate(flops=flops, transcendentals=0,
                           bytes_accessed=int(bytes_accessed))

    kernel = functools.partial(mlp_kernel, sub_b=sub_b, n_sub=n_sub)

    return pl.pallas_call(
        kernel,
        out_shape=jax.ShapeDtypeStruct((B, num_classes), x.dtype),
        grid_spec=pltpu.PrefetchScalarGridSpec(
            num_scalar_prefetch=0,
            grid=grid,
            in_specs=[
                # (block_b, in_dim): last dim == full array dim -> legal.
                pl.BlockSpec((block_b, in_dim), lambda i: (i, 0)),
                _const_spec(w1), _const_spec(b1),
                _const_spec(w2), _const_spec(b2),
                _const_spec(w3), _const_spec(b3),
            ],
            # (block_b, num_classes): last dim == full array dim -> legal,
            # lane-sparse vst into VMEM is negligible, HBM writeback is dense.
            out_specs=pl.BlockSpec((block_b, num_classes), lambda i: (i, 0)),
        ),
        compiler_params=pltpu.CompilerParams(
            dimension_semantics=("parallel",)),
        cost_estimate=cost,
    )(x, w1, b1, w2, b2, w3, b3)


def init_params(key, input_dim=15, hidden_dim=64, num_classes=4):
    """Deterministic synthetic parameters (PyTorch-like uniform fan-in init)."""
    ks = jax.random.split(key, 6)

    def linear(kw, kb, fan_in, fan_out):
        bound = 1.0 / jnp.sqrt(fan_in)
        w = jax.random.uniform(kw, (fan_in, fan_out), jnp.float32, -bound, bound)
        b = jax.random.uniform(kb, (1, fan_out), jnp.float32, -bound, bound)
        return w, b

    w1, b1 = linear(ks[0], ks[1], input_dim, hidden_dim)
    w2, b2 = linear(ks[2], ks[3], hidden_dim, hidden_dim)
    w3, b3 = linear(ks[4], ks[5], hidden_dim, num_classes)
    return {"w1": w1, "b1": b1, "w2": w2, "b2": b2, "w3": w3, "b3": b3}


def reference_mlp(x, p):
    h1 = jnp.maximum(x @ p["w1"] + p["b1"], 0.0)
    h2 = jnp.maximum(h1 @ p["w2"] + p["b2"], 0.0)
    return h2 @ p["w3"] + p["b3"]


if __name__ == "__main__":
    key = jax.random.PRNGKey(0)
    k_params, k_x1, k_x2 = jax.random.split(key, 3)

    input_dim, hidden_dim, num_classes = 15, 64, 4
    params = init_params(k_params, input_dim, hidden_dim, num_classes)

    # 1) Small batch (toy usage), f32 weights: single grid step, strict check.
    x_small = jax.random.normal(k_x1, (8, input_dim), jnp.float32)
    out_small = jax.block_until_ready(
        trajectory_mlp(x_small, params, param_dtype=None))
    ref_small = reference_mlp(x_small, params)
    assert out_small.shape == (8, num_classes), out_small.shape
    assert jnp.allclose(out_small, ref_small, atol=2e-5, rtol=2e-5), \
        "small-batch f32 mismatch vs reference"

    # 2) Larger batch, default (bf16 weights, f32 accumulation): multi-step
    #    grid with a ragged tail tile.
    x_big = jax.random.normal(k_x2, (300, input_dim), jnp.float32)
    out_big = jax.block_until_ready(trajectory_mlp(x_big, params))
    ref_big = reference_mlp(x_big, params)
    assert out_big.shape == (300, num_classes), out_big.shape
    assert jnp.allclose(out_big, ref_big, atol=5e-2, rtol=5e-2), \
        "large-batch bf16-weight mismatch vs reference"

    # 3) f32-weight path on the multi-step grid + in-kernel sub-block loop.
    out_big_f32 = jax.block_until_ready(
        trajectory_mlp(x_big, params, block_b=128, sub_b=64, param_dtype=None))
    assert jnp.allclose(out_big_f32, ref_big, atol=2e-5, rtol=2e-5), \
        "large-batch f32 mismatch vs reference"

    print("KERNEL_OK")
</pallas_src>

<mosaic_0001>
module attributes {stable_mosaic.version = 11 : i64} {
  func.func @mlp_kernel(%arg0: i32, %arg1: memref<8x15xf32, #tpu.memory_space<vmem>>, %arg2: memref<15x64xf32, #tpu.memory_space<vmem>>, %arg3: memref<1x64xf32, #tpu.memory_space<vmem>>, %arg4: memref<64x64xf32, #tpu.memory_space<vmem>>, %arg5: memref<1x64xf32, #tpu.memory_space<vmem>>, %arg6: memref<64x4xf32, #tpu.memory_space<vmem>>, %arg7: memref<1x4xf32, #tpu.memory_space<vmem>>, %arg8: memref<8x4xf32, #tpu.memory_space<vmem>>) attributes {dimension_semantics = [#tpu.dimension_semantics<parallel>], iteration_bounds = array<i64: 1>, scalar_prefetch = 0 : i64, scratch_operands = 0 : i64, tpu.core_type = #tpu.core_type<tc>, window_params = [{transform_indices = @transform_0, window_bounds = array<i64: 8, 15>}, {pipeline_mode = #tpu.pipeline_mode<synchronous>, transform_indices = @transform_1, window_bounds = array<i64: 15, 64>}, {pipeline_mode = #tpu.pipeline_mode<synchronous>, transform_indices = @transform_2, window_bounds = array<i64: 1, 64>}, {pipeline_mode = #tpu.pipeline_mode<synchronous>, transform_indices = @transform_3, window_bounds = array<i64: 64, 64>}, {pipeline_mode = #tpu.pipeline_mode<synchronous>, transform_indices = @transform_4, window_bounds = array<i64: 1, 64>}, {pipeline_mode = #tpu.pipeline_mode<synchronous>, transform_indices = @transform_5, window_bounds = array<i64: 64, 4>}, {pipeline_mode = #tpu.pipeline_mode<synchronous>, transform_indices = @transform_6, window_bounds = array<i64: 1, 4>}, {transform_indices = @transform_7, window_bounds = array<i64: 8, 4>}]} {
    %c0_i32 = arith.constant 0 : i32
    %c8_i32 = arith.constant 8 : i32
    %0 = arith.muli %c0_i32, %c8_i32 : i32
    %1 = tpu.assume_multiple %0, 8 : i32
    %2 = arith.index_cast %1 : i32 to index
    %c0 = arith.constant 0 : index
    %3 = vector.load %arg1[%2, %c0] : memref<8x15xf32, #tpu.memory_space<vmem>>, vector<8x15xf32>
    %c0_0 = arith.constant 0 : index
    %c0_1 = arith.constant 0 : index
    %4 = vector.load %arg2[%c0_0, %c0_1] : memref<15x64xf32, #tpu.memory_space<vmem>>, vector<15x64xf32>
    %cst = arith.constant dense<0.000000e+00> : vector<8x64xf32>
    %5 = tpu.matmul %3, %4, %cst {dimension_numbers = #tpu.dot_dimension_numbers<[1], [0], [0], [1], [0, 0, 1, 1], [], []>} : vector<8x15xf32>, vector<15x64xf32>, vector<8x64xf32> -> vector<8x64xf32>
    %c0_2 = arith.constant 0 : index
    %c0_3 = arith.constant 0 : index
    %6 = vector.load %arg3[%c0_2, %c0_3] : memref<1x64xf32, #tpu.memory_space<vmem>>, vector<1x64xf32>
    %7 = vector.broadcast %6 : vector<1x64xf32> to vector<8x64xf32>
    %8 = arith.addf %5, %7 : vector<8x64xf32>
    %cst_4 = arith.constant 0.000000e+00 : f32
    %9 = vector.broadcast %cst_4 : f32 to vector<8x64xf32>
    %10 = arith.maximumf %8, %9 : vector<8x64xf32>
    %c0_5 = arith.constant 0 : index
    %c0_6 = arith.constant 0 : index
    %11 = vector.load %arg4[%c0_5, %c0_6] : memref<64x64xf32, #tpu.memory_space<vmem>>, vector<64x64xf32>
    %cst_7 = arith.constant dense<0.000000e+00> : vector<8x64xf32>
    %12 = tpu.matmul %10, %11, %cst_7 {dimension_numbers = #tpu.dot_dimension_numbers<[1], [0], [0], [1], [0, 0, 1, 1], [], []>} : vector<8x64xf32>, vector<64x64xf32>, vector<8x64xf32> -> vector<8x64xf32>
    %c0_8 = arith.constant 0 : index
    %c0_9 = arith.constant 0 : index
    %13 = vector.load %arg5[%c0_8, %c0_9] : memref<1x64xf32, #tpu.memory_space<vmem>>, vector<1x64xf32>
    %14 = vector.broadcast %13 : vector<1x64xf32> to vector<8x64xf32>
    %15 = arith.addf %12, %14 : vector<8x64xf32>
    %cst_10 = arith.constant 0.000000e+00 : f32
    %16 = vector.broadcast %cst_10 : f32 to vector<8x64xf32>
    %17 = arith.maximumf %15, %16 : vector<8x64xf32>
    %c0_11 = arith.constant 0 : index
    %c0_12 = arith.constant 0 : index
    %18 = vector.load %arg6[%c0_11, %c0_12] : memref<64x4xf32, #tpu.memory_space<vmem>>, vector<64x4xf32>
    %cst_13 = arith.constant dense<0.000000e+00> : vector<8x4xf32>
    %19 = tpu.matmul %17, %18, %cst_13 {dimension_numbers = #tpu.dot_dimension_numbers<[1], [0], [0], [1], [0, 0, 1, 1], [], []>} : vector<8x64xf32>, vector<64x4xf32>, vector<8x4xf32> -> vector<8x4xf32>
    %c0_14 = arith.constant 0 : index
    %c0_15 = arith.constant 0 : index
    %20 = vector.load %arg7[%c0_14, %c0_15] : memref<1x4xf32, #tpu.memory_space<vmem>>, vector<1x4xf32>
    %21 = vector.broadcast %20 : vector<1x4xf32> to vector<8x4xf32>
    %22 = arith.addf %19, %21 : vector<8x4xf32>
    %23 = arith.index_cast %1 : i32 to index
    %c0_16 = arith.constant 0 : index
    %24 = vector.load %arg8[%23, %c0_16] : memref<8x4xf32, #tpu.memory_space<vmem>>, vector<8x4xf32>
    tpu.vector_store %arg8[%23, %c0_16], %22 {strides = array<i32>} : memref<8x4xf32, #tpu.memory_space<vmem>>, vector<8x4xf32>,
    %c1_i32 = arith.constant 1 : i32
    return
  }
  func.func @transform_0(%arg0: i32) -> (i32, i32) {
    %c0_i32 = arith.constant 0 : i32
    %c0_i32_0 = arith.constant 0 : i32
    return %arg0, %c0_i32 : i32, i32
  }
  func.func @transform_1(%arg0: i32) -> (i32, i32) {
    %c0_i32 = arith.constant 0 : i32
    %c0_i32_0 = arith.constant 0 : i32
    %c0_i32_1 = arith.constant 0 : i32
    return %c0_i32, %c0_i32_0 : i32, i32
  }
  func.func @transform_2(%arg0: i32) -> (i32, i32) {
    %c0_i32 = arith.constant 0 : i32
    %c0_i32_0 = arith.constant 0 : i32
    %c0_i32_1 = arith.constant 0 : i32
    return %c0_i32, %c0_i32_0 : i32, i32
  }
  func.func @transform_3(%arg0: i32) -> (i32, i32) {
    %c0_i32 = arith.constant 0 : i32
    %c0_i32_0 = arith.constant 0 : i32
    %c0_i32_1 = arith.constant 0 : i32
    return %c0_i32, %c0_i32_0 : i32, i32
  }
  func.func @transform_4(%arg0: i32) -> (i32, i32) {
    %c0_i32 = arith.constant 0 : i32
    %c0_i32_0 = arith.constant 0 : i32
    %c0_i32_1 = arith.constant 0 : i32
    return %c0_i32, %c0_i32_0 : i32, i32
  }
  func.func @transform_5(%arg0: i32) -> (i32, i32) {
    %c0_i32 = arith.constant 0 : i32
    %c0_i32_0 = arith.constant 0 : i32
    %c0_i32_1 = arith.constant 0 : i32
    return %c0_i32, %c0_i32_0 : i32, i32
  }
  func.func @transform_6(%arg0: i32) -> (i32, i32) {
    %c0_i32 = arith.constant 0 : i32
    %c0_i32_0 = arith.constant 0 : i32
    %c0_i32_1 = arith.constant 0 : i32
    return %c0_i32, %c0_i32_0 : i32, i32
  }
  func.func @transform_7(%arg0: i32) -> (i32, i32) {
    %c0_i32 = arith.constant 0 : i32
    %c0_i32_0 = arith.constant 0 : i32
    return %arg0, %c0_i32 : i32, i32
  }
}

</mosaic_0001>

<llo_original>
// kernel: tpu_custom_call.1
$region0: #{tpu_custom_call.1}
  #allocation0 [shape = 'u32[]', space=smem, size = 0x4, offset = 0x4, fixed_abs, tag = 'smem constant byte address 0x4 - core index']
  #allocation1 [shape = 'u32[144,128]{1,0:T(1,128)}', space=vmem, size = 0x12000, scoped, tag = 'internal scratch']
  %s0 = inlined_call_operand.vmem [shape: f32[8,15], index: 0, kind: input, shape index: {}]
  %s1 = inlined_call_operand.hbm [shape: f32[15,64], index: 1, kind: input, shape index: {}]
  %s2 = inlined_call_operand.vmem [shape: f32[1,64], index: 2, kind: input, shape index: {}]
  %s3 = inlined_call_operand.vmem [shape: f32[64,64], index: 3, kind: input, shape index: {}]
  %s4 = inlined_call_operand.hbm [shape: f32[1,64], index: 4, kind: input, shape index: {}]
  %s5 = inlined_call_operand.vmem [shape: f32[64,4], index: 5, kind: input, shape index: {}]
  %s6 = inlined_call_operand.vmem [shape: f32[1,4], index: 6, kind: input, shape index: {}]
  %s7 = inlined_call_operand.vmem [shape: f32[8,4], index: 7, kind: output, shape index: {}]
  %s8 = sld [smem:[#allocation0]]
  $region46: #{tpu_custom_call.1} parent=0
    _
  %s10 = ssub.s32 1, %s8
  %s11 = scalar_select 0, %s10, %s8
  $region1: #{tpu_custom_call.1} parent=0
    #allocation2 [shape = 'u8[8192]{0}', space=vmem, size = 0x2000, scoped, tag = 'input window, operand 1, single buffered']
    #allocation3 [shape = 's32[1]{0}', space=sflag, size = 0x4, scoped, tag = 'scoped memory for tpu_custom_call.1']
    #allocation4 [shape = 'u8[512]{0}', space=vmem, size = 0x400, scoped, tag = 'input window, operand 4, single buffered']
    #allocation5 [shape = 's32[1]{0}', space=sflag, size = 0x4, scoped, tag = 'scoped memory for tpu_custom_call.1']
    %12 = vsyncpa [#allocation3], 0
    %13 = vsyncpa [#allocation5], 0
    // Predicated region
    $region2: #{tpu_custom_call.1} parent=1 // pred_check
      _
    $region3: #{tpu_custom_call.1} parent=1 // pred_check_branch
      %15 = sbr.rel (0) target = $region5
    $region4: #{tpu_custom_call.1} parent=1 // pred_region
      _
    $region5: #{tpu_custom_call.1} parent=1 // pred_fallthru
      _
    // Predicated region
    $region6: #{tpu_custom_call.1} parent=1 // pred_check
      _
    $region7: #{tpu_custom_call.1} parent=1 // pred_check_branch
      %17 = sbr.rel (0) target = $region9
    $region8: #{tpu_custom_call.1} parent=1 // pred_region
      %s19 = ssub.s32 256, 256
      %20 = vsyncadd [#allocation3], %s19
      %s21 = sshll.u32 [#allocation2], 4
      %s22 = int_to_ptr.vmem [resolvable:$true] %s21
      %27 = dma.hbm_to_vmem [thread:$0]  %s1, 256, %s22, [#allocation3], 128, 128, 8
    $region9: #{tpu_custom_call.1} parent=1 // pred_fallthru
      _
    // Predicated region
    $region10: #{tpu_custom_call.1} parent=1 // pred_check
      _
    $region11: #{tpu_custom_call.1} parent=1 // pred_check_branch
      %29 = sbr.rel (0) target = $region13
    $region12: #{tpu_custom_call.1} parent=1 // pred_region
      _
    $region13: #{tpu_custom_call.1} parent=1 // pred_fallthru
      _
    // Predicated region
    $region14: #{tpu_custom_call.1} parent=1 // pred_check
      _
    $region15: #{tpu_custom_call.1} parent=1 // pred_check_branch
      %31 = sbr.rel (0) target = $region17
    $region16: #{tpu_custom_call.1} parent=1 // pred_region
      _
    $region17: #{tpu_custom_call.1} parent=1 // pred_fallthru
      _
    // Predicated region
    $region18: #{tpu_custom_call.1} parent=1 // pred_check
      _
    $region19: #{tpu_custom_call.1} parent=1 // pred_check_branch
      %33 = sbr.rel (0) target = $region21
    $region20: #{tpu_custom_call.1} parent=1 // pred_region
      %s35 = ssub.s32 16, 16
      %36 = vsyncadd [#allocation5], %s35
      %s38 = sshll.u32 [#allocation4], 4
      %s39 = int_to_ptr.vmem [resolvable:$true] %s38
      %41 = dma.hbm_to_vmem [thread:$0]  %s4, 16, %s39, [#allocation5]
    $region21: #{tpu_custom_call.1} parent=1 // pred_fallthru
      _
    // Predicated region
    $region22: #{tpu_custom_call.1} parent=1 // pred_check
      _
    $region23: #{tpu_custom_call.1} parent=1 // pred_check_branch
      %43 = sbr.rel (0) target = $region25
    $region24: #{tpu_custom_call.1} parent=1 // pred_region
      _
    $region25: #{tpu_custom_call.1} parent=1 // pred_fallthru
      _
    // Predicated region
    $region26: #{tpu_custom_call.1} parent=1 // pred_check
      _
    $region27: #{tpu_custom_call.1} parent=1 // pred_check_branch
      %45 = sbr.rel (0) target = $region29
    $region28: #{tpu_custom_call.1} parent=1 // pred_region
      _
    $region29: #{tpu_custom_call.1} parent=1 // pred_fallthru
      _
    // Predicated region
    $region30: #{tpu_custom_call.1} parent=1 // pred_check
      _
    $region31: #{tpu_custom_call.1} parent=1 // pred_check_branch
      %47 = sbr.rel (0) target = $region33
    $region32: #{tpu_custom_call.1} parent=1 // pred_region
      %48 = dma.done [#allocation3], 256
    $region33: #{tpu_custom_call.1} parent=1 // pred_fallthru
      _
    // Predicated region
    $region34: #{tpu_custom_call.1} parent=1 // pred_check
      _
    $region35: #{tpu_custom_call.1} parent=1 // pred_check_branch
      %50 = sbr.rel (0) target = $region37
    $region36: #{tpu_custom_call.1} parent=1 // pred_region
      %51 = dma.done [#allocation5], 16
    $region37: #{tpu_custom_call.1} parent=1 // pred_fallthru
      _
    %v52 = vld [vmem:[%s0] sm:$0xff]
    %v53 = vld [vmem:[#allocation2] sm:$0xff]
    %v54 = vld [vmem:[#allocation2 + $0x8] sm:$0x7f]
    %v55 = vld [vmem:[%s2] sm:$0x1]
    %v57 = vlaneseq
    %v58 = vshrl.u32 %v57, 7
    %v59 = vsub.s32 0, %v58
    %v60 = vrot.slane %v55, %v59
    %vm62 = vcmask 121856
    %v64 = vsel %vm62, %v52, 0
    %vm66 = vcmask 1046528
    %v68 = vsel %vm66, %v54, 0
    %70 = vmatprep.subr.mxu0 0.0
    %71 = vmatpush1.msra.mxu0 0.0
    %72 = vmatprep.subr.mxu0 0.0
    %73 = vmatpush1.msra.mxu0 0.0
    %74 = vmatprep.subr.mxu0 0.0
    %75 = vmatpush1.msra.mxu0 0.0
    %76 = vmatprep.subr.mxu0 0.0
    %77 = vmatpush1.msra.mxu0 0.0
    %78 = vmatprep.subr.mxu0 0.0
    %79 = vmatpush1.msra.mxu0 0.0
    %80 = vmatprep.subr.mxu0 0.0
    %81 = vmatpush1.msra.mxu0 0.0
    %82 = vmatprep.subr.mxu0 0.0
    %83 = vmatpush1.msra.mxu0 0.0
    %84 = vmatprep.subr.mxu0 0.0
    %85 = vmatpush1.msra.mxu0 0.0
    %86 = vmatprep.subr.mxu0 0.0
    %87 = vmatpush1.msra.mxu0 0.0
    %88 = vmatprep.subr.mxu0 0.0
    %89 = vmatpush1.msra.mxu0 0.0
    %90 = vmatprep.subr.mxu0 0.0
    %91 = vmatpush1.msra.mxu0 0.0
    %92 = vmatprep.subr.mxu0 0.0
    %93 = vmatpush1.msra.mxu0 0.0
    %94 = vmatprep.subr.mxu0 0.0
    %95 = vmatpush1.msra.mxu0 0.0
    %96 = vmatprep.subr.mxu0 0.0
    %97 = vmatpush1.msra.mxu0 0.0
    %98 = vmatprep.subr.mxu0 0.0
    %99 = vmatpush1.msra.mxu0 %v68
    %100 = vmatprep.subr.mxu0 0.0
    %101 = vmatpush1.msra.mxu0 %v53
    %102 = vmatprep.subr.mxu0 0.0
    %103 = vmatpush2.msra.mxu0 0.0
    %104 = vmatprep.subr.mxu0 0.0
    %105 = vmatpush2.msra.mxu0 0.0
    %106 = vmatprep.subr.mxu0 0.0
    %107 = vmatpush2.msra.mxu0 0.0
    %108 = vmatprep.subr.mxu0 0.0
    %109 = vmatpush2.msra.mxu0 0.0
    %110 = vmatprep.subr.mxu0 0.0
    %111 = vmatpush2.msra.mxu0 0.0
    %112 = vmatprep.subr.mxu0 0.0
    %113 = vmatpush2.msra.mxu0 0.0
    %114 = vmatprep.subr.mxu0 0.0
    %115 = vmatpush2.msra.mxu0 0.0
    %116 = vmatprep.subr.mxu0 0.0
    %117 = vmatpush2.msra.mxu0 0.0
    %118 = vmatprep.subr.mxu0 0.0
    %119 = vmatpush2.msra.mxu0 0.0
    %120 = vmatprep.subr.mxu0 0.0
    %121 = vmatpush2.msra.mxu0 0.0
    %122 = vmatprep.subr.mxu0 0.0
    %123 = vmatpush2.msra.mxu0 0.0
    %124 = vmatprep.subr.mxu0 0.0
    %125 = vmatpush2.msra.mxu0 0.0
    %126 = vmatprep.subr.mxu0 0.0
    %127 = vmatpush2.msra.mxu0 0.0
    %128 = vmatprep.subr.mxu0 0.0
    %129 = vmatpush2.msra.mxu0 0.0
    %130 = vmatprep.subr.mxu0 0.0
    %131 = vmatpush2.msra.mxu0 0.0
    %132 = vmatprep.subr.mxu0 0.0
    %133 = vmatpush2.msra.mxu0 0.0
    %134 = vmatprep.mubr.f32.mxu0 0.0
    %135 = vmatmul.mubr.f32.gmra.mxu0 %v64
    %v136 = vpop.f32.mrf.mxu0
    %v137 = vadd.f32 %v60, %v136
    %v138 = vpop.f32.mrf.mxu0
    %139 = vdwg.mxu0
    %v140 = vmax.f32 %v137, 0.0
    %v141 = vld [vmem:[%s3] sm:$0xff]
    %v142 = vld [vmem:[%s3 + $0x8] sm:$0xff]
    %v143 = vld [vmem:[%s3 + $0x10] sm:$0xff]
    %v144 = vld [vmem:[%s3 + $0x18] sm:$0xff]
    %v145 = vld [vmem:[%s3 + $0x20] sm:$0xff]
    %v146 = vld [vmem:[%s3 + $0x28] sm:$0xff]
    %v147 = vld [vmem:[%s3 + $0x30] sm:$0xff]
    %v148 = vld [vmem:[%s3 + $0x38] sm:$0xff]
    %v149 = vld [vmem:[#allocation4] sm:$0x1]
    %v151 = vlaneseq
    %v152 = vshrl.u32 %v151, 7
    %v153 = vsub.s32 0, %v152
    %v154 = vrot.slane %v149, %v153
    %vm156 = vcmask 523264
    %v158 = vsel %vm156, %v140, 0
    %160 = vmatprep.subr.mxu0 0.0
    %161 = vmatpush1.msra.mxu0 0.0
    %162 = vmatprep.subr.mxu0 0.0
    %163 = vmatpush1.msra.mxu0 0.0
    %164 = vmatprep.subr.mxu0 0.0
    %165 = vmatpush1.msra.mxu0 0.0
    %166 = vmatprep.subr.mxu0 0.0
    %167 = vmatpush1.msra.mxu0 0.0
    %168 = vmatprep.subr.mxu0 0.0
    %169 = vmatpush1.msra.mxu0 0.0
    %170 = vmatprep.subr.mxu0 0.0
    %171 = vmatpush1.msra.mxu0 0.0
    %172 = vmatprep.subr.mxu0 0.0
    %173 = vmatpush1.msra.mxu0 0.0
    %174 = vmatprep.subr.mxu0 0.0
    %175 = vmatpush1.msra.mxu0 0.0
    %176 = vmatprep.subr.mxu0 0.0
    %177 = vmatpush1.msra.mxu0 %v148
    %178 = vmatprep.subr.mxu0 0.0
    %179 = vmatpush1.msra.mxu0 %v147
    %180 = vmatprep.subr.mxu0 0.0
    %181 = vmatpush1.msra.mxu0 %v146
    %182 = vmatprep.subr.mxu0 0.0
    %183 = vmatpush1.msra.mxu0 %v145
    %184 = vmatprep.subr.mxu0 0.0
    %185 = vmatpush1.msra.mxu0 %v144
    %186 = vmatprep.subr.mxu0 0.0
    %187 = vmatpush1.msra.mxu0 %v143
    %188 = vmatprep.subr.mxu0 0.0
    %189 = vmatpush1.msra.mxu0 %v142
    %190 = vmatprep.subr.mxu0 0.0
    %191 = vmatpush1.msra.mxu0 %v141
    %192 = vmatprep.subr.mxu0 0.0
    %193 = vmatpush2.msra.mxu0 0.0
    %194 = vmatprep.subr.mxu0 0.0
    %195 = vmatpush2.msra.mxu0 0.0
    %196 = vmatprep.subr.mxu0 0.0
    %197 = vmatpush2.msra.mxu0 0.0
    %198 = vmatprep.subr.mxu0 0.0
    %199 = vmatpush2.msra.mxu0 0.0
    %200 = vmatprep.subr.mxu0 0.0
    %201 = vmatpush2.msra.mxu0 0.0
    %202 = vmatprep.subr.mxu0 0.0
    %203 = vmatpush2.msra.mxu0 0.0
    %204 = vmatprep.subr.mxu0 0.0
    %205 = vmatpush2.msra.mxu0 0.0
    %206 = vmatprep.subr.mxu0 0.0
    %207 = vmatpush2.msra.mxu0 0.0
    %208 = vmatprep.subr.mxu0 0.0
    %209 = vmatpush2.msra.mxu0 0.0
    %210 = vmatprep.subr.mxu0 0.0
    %211 = vmatpush2.msra.mxu0 0.0
    %212 = vmatprep.subr.mxu0 0.0
    %213 = vmatpush2.msra.mxu0 0.0
    %214 = vmatprep.subr.mxu0 0.0
    %215 = vmatpush2.msra.mxu0 0.0
    %216 = vmatprep.subr.mxu0 0.0
    %217 = vmatpush2.msra.mxu0 0.0
    %218 = vmatprep.subr.mxu0 0.0
    %219 = vmatpush2.msra.mxu0 0.0
    %220 = vmatprep.subr.mxu0 0.0
    %221 = vmatpush2.msra.mxu0 0.0
    %222 = vmatprep.subr.mxu0 0.0
    %223 = vmatpush2.msra.mxu0 0.0
    %224 = vmatprep.mubr.f32.mxu0 0.0
    %225 = vmatmul.mubr.f32.gmra.mxu0 %v158
    %v226 = vpop.f32.mrf.mxu0
    %v227 = vadd.f32 %v154, %v226
    %v228 = vpop.f32.mrf.mxu0
    %229 = vdwg.mxu0
    %v230 = vmax.f32 %v227, 0.0
    %v231 = vld [vmem:[%s5] sm:$0xff]
    %v232 = vld [vmem:[%s5 + $0x8] sm:$0xff]
    %v233 = vld [vmem:[%s5 + $0x10] sm:$0xff]
    %v234 = vld [vmem:[%s5 + $0x18] sm:$0xff]
    %v235 = vld [vmem:[%s5 + $0x20] sm:$0xff]
    %v236 = vld [vmem:[%s5 + $0x28] sm:$0xff]
    %v237 = vld [vmem:[%s5 + $0x30] sm:$0xff]
    %v238 = vld [vmem:[%s5 + $0x38] sm:$0xff]
    %v239 = vld [vmem:[%s6] sm:$0x1]
    %v241 = vlaneseq
    %v242 = vshrl.u32 %v241, 7
    %v243 = vsub.s32 0, %v242
    %v244 = vrot.slane %v239, %v243
    %v247 = vsel %vm156, %v230, 0
    %249 = vmatprep.subr.mxu0 0.0
    %250 = vmatpush1.msra.mxu0 0.0
    %251 = vmatprep.subr.mxu0 0.0
    %252 = vmatpush1.msra.mxu0 0.0
    %253 = vmatprep.subr.mxu0 0.0
    %254 = vmatpush1.msra.mxu0 0.0
    %255 = vmatprep.subr.mxu0 0.0
    %256 = vmatpush1.msra.mxu0 0.0
    %257 = vmatprep.subr.mxu0 0.0
    %258 = vmatpush1.msra.mxu0 0.0
    %259 = vmatprep.subr.mxu0 0.0
    %260 = vmatpush1.msra.mxu0 0.0
    %261 = vmatprep.subr.mxu0 0.0
    %262 = vmatpush1.msra.mxu0 0.0
    %263 = vmatprep.subr.mxu0 0.0
    %264 = vmatpush1.msra.mxu0 0.0
    %265 = vmatprep.subr.mxu0 0.0
    %266 = vmatpush1.msra.mxu0 %v238
    %267 = vmatprep.subr.mxu0 0.0
    %268 = vmatpush1.msra.mxu0 %v237
    %269 = vmatprep.subr.mxu0 0.0
    %270 = vmatpush1.msra.mxu0 %v236
    %271 = vmatprep.subr.mxu0 0.0
    %272 = vmatpush1.msra.mxu0 %v235
    %273 = vmatprep.subr.mxu0 0.0
    %274 = vmatpush1.msra.mxu0 %v234
    %275 = vmatprep.subr.mxu0 0.0
    %276 = vmatpush1.msra.mxu0 %v233
    %277 = vmatprep.subr.mxu0 0.0
    %278 = vmatpush1.msra.mxu0 %v232
    %279 = vmatprep.subr.mxu0 0.0
    %280 = vmatpush1.msra.mxu0 %v231
    %281 = vmatprep.subr.mxu0 0.0
    %282 = vmatpush2.msra.mxu0 0.0
    %283 = vmatprep.subr.mxu0 0.0
    %284 = vmatpush2.msra.mxu0 0.0
    %285 = vmatprep.subr.mxu0 0.0
    %286 = vmatpush2.msra.mxu0 0.0
    %287 = vmatprep.subr.mxu0 0.0
    %288 = vmatpush2.msra.mxu0 0.0
    %289 = vmatprep.subr.mxu0 0.0
    %290 = vmatpush2.msra.mxu0 0.0
    %291 = vmatprep.subr.mxu0 0.0
    %292 = vmatpush2.msra.mxu0 0.0
    %293 = vmatprep.subr.mxu0 0.0
    %294 = vmatpush2.msra.mxu0 0.0
    %295 = vmatprep.subr.mxu0 0.0
    %296 = vmatpush2.msra.mxu0 0.0
    %297 = vmatprep.subr.mxu0 0.0
    %298 = vmatpush2.msra.mxu0 0.0
    %299 = vmatprep.subr.mxu0 0.0
    %300 = vmatpush2.msra.mxu0 0.0
    %301 = vmatprep.subr.mxu0 0.0
    %302 = vmatpush2.msra.mxu0 0.0
    %303 = vmatprep.subr.mxu0 0.0
    %304 = vmatpush2.msra.mxu0 0.0
    %305 = vmatprep.subr.mxu0 0.0
    %306 = vmatpush2.msra.mxu0 0.0
    %307 = vmatprep.subr.mxu0 0.0
    %308 = vmatpush2.msra.mxu0 0.0
    %309 = vmatprep.subr.mxu0 0.0
    %310 = vmatpush2.msra.mxu0 0.0
    %311 = vmatprep.subr.mxu0 0.0
    %312 = vmatpush2.msra.mxu0 0.0
    %313 = vmatprep.mubr.f32.mxu0 0.0
    %314 = vmatmul.mubr.f32.gmra.mxu0 %v247
    %v315 = vpop.f32.mrf.mxu0
    %v316 = vadd.f32 %v244, %v315
    %v317 = vpop.f32.mrf.mxu0
    %318 = vdwg.mxu0
    %vm319 = vcmask 31744
    %320 = vst.msk [vmem:[%s7] sm:$0xff] %vm319, %v316
    // Predicated region
    $region38: #{tpu_custom_call.1} parent=1 // pred_check
      _
    $region39: #{tpu_custom_call.1} parent=1 // pred_check_branch
      %322 = sbr.rel (0) target = $region41
    $region40: #{tpu_custom_call.1} parent=1 // pred_region
      _
    $region41: #{tpu_custom_call.1} parent=1 // pred_fallthru
      _
    // Predicated region
    $region42: #{tpu_custom_call.1} parent=1 // pred_check
      _
    $region43: #{tpu_custom_call.1} parent=1 // pred_check_branch
      %324 = sbr.rel (0) target = $region45
    $region44: #{tpu_custom_call.1} parent=1 // pred_region
      _
    $region45: #{tpu_custom_call.1} parent=1 // pred_fallthru
      _
    %325 = vsyncpa [#allocation3], 1
    %326 = vsyncpa [#allocation5], 1

</llo_original>
